<compile_context>
chip_gen: v5e
topology: v5e:2x2
jax: 0.10.0
libtpu: 0.0.40
codegen_flags: <defaults>
</compile_context>

<pallas_src>
import functools

import jax
import jax.numpy as jnp
from jax.experimental import pallas as pl
from jax.experimental.pallas import tpu as pltpu


def _round_up(n, m):
    return ((n + m - 1) // m) * m


def _nbytes(a):
    return a.size * a.dtype.itemsize


def policy_net_kernel(x_ref, w1_ref, b1_ref, w2_ref, b2_ref, w3_ref, b3_ref,
                      out_ref):
    # fc1 + ReLU   (bf16 MXU operands, f32 accumulate; x cast done in-kernel)
    x = x_ref[...].astype(jnp.bfloat16)
    h = jnp.dot(x, w1_ref[...], preferred_element_type=jnp.float32)
    h = jnp.maximum(h + b1_ref[...], 0.0)
    # fc2 + ReLU
    h = jnp.dot(h.astype(jnp.bfloat16), w2_ref[...],
                preferred_element_type=jnp.float32)
    h = jnp.maximum(h + b2_ref[...], 0.0)
    # fc3 (output lane-padded to 128; padded columns carry a -1e30 bias)
    logits = jnp.dot(h.astype(jnp.bfloat16), w3_ref[...],
                     preferred_element_type=jnp.float32)
    logits = logits + b3_ref[...]
    # Numerically stable softmax over the padded last dim. Padded columns give
    # exp(-1e30 - m) == 0, so real columns match torch.softmax exactly.
    m = jnp.max(logits, axis=-1, keepdims=True)
    e = jnp.exp(logits - m)
    denom = jnp.sum(e, axis=-1, keepdims=True)
    probs = e / denom                       # exact normalization (rows sum to 1)
    # Write back only the real action columns -> 16x less HBM output traffic.
    a = out_ref.shape[-1]
    out_ref[...] = probs[:, :a].astype(out_ref.dtype)


def prepare_params(params):
    """One-time weight prep (call at init, NOT per forward): pad fc3 output to
    a multiple of 128 lanes (bias pad = -1e30 so it vanishes under softmax) and
    cast weight matrices to bf16 for the MXU."""
    w1, b1, w2, b2, w3, b3 = params
    hidden, action_dim = w3.shape
    a_pad = _round_up(action_dim, 128)
    w3_p = jnp.zeros((hidden, a_pad), jnp.float32).at[:, :action_dim].set(w3)
    b3_p = jnp.full((1, a_pad), -1e30, jnp.float32).at[:, :action_dim].set(
        b3.reshape(1, -1))
    prep = (w1.astype(jnp.bfloat16), b1.reshape(1, -1).astype(jnp.float32),
            w2.astype(jnp.bfloat16), b2.reshape(1, -1).astype(jnp.float32),
            w3_p.astype(jnp.bfloat16), b3_p)
    return prep, action_dim


def policy_net_forward(x, prep, *, action_dim, tm=1024):
    """Forward pass. x: [B, input_dim] f32, prep from prepare_params().
    Returns [B, action_dim] f32 action probabilities."""
    w1, b1, w2, b2, w3, b3 = prep
    B, in_dim = x.shape
    hidden = w1.shape[1]
    a_pad = w3.shape[1]

    # Batch tiling: TM rows per grid step (multiple of 16 for bf16 sublanes).
    b_r = _round_up(B, 16)
    TM = min(tm, b_r)
    # If the whole batch fits one grid step but is splittable, use >=2 steps so
    # the "parallel" axis can engage both TensorCores on v7x.
    if TM >= b_r and b_r >= 32:
        TM = _round_up(pl.cdiv(b_r, 2), 16)
    nb = pl.cdiv(b_r, TM)
    b_pad = nb * TM
    x_in = x if b_pad == B else jnp.zeros((b_pad, in_dim), x.dtype).at[:B].set(x)

    batch_map = lambda i: (i, 0)   # activation tiles walk the batch axis
    const_map = lambda i: (0, 0)   # weights/biases pinned in VMEM across grid

    flops = 2 * b_pad * (in_dim * hidden + hidden * hidden + hidden * a_pad)
    transcendentals = b_pad * a_pad                       # exp
    bytes_accessed = (_nbytes(x_in) + _nbytes(w1) + _nbytes(b1) + _nbytes(w2)
                      + _nbytes(b2) + _nbytes(w3) + _nbytes(b3)
                      + b_pad * action_dim * 4)

    out = pl.pallas_call(
        policy_net_kernel,
        out_shape=jax.ShapeDtypeStruct((b_pad, action_dim), jnp.float32),
        grid_spec=pltpu.PrefetchScalarGridSpec(
            num_scalar_prefetch=0,
            grid=(nb,),
            in_specs=[
                pl.BlockSpec((TM, in_dim), batch_map),
                pl.BlockSpec((in_dim, hidden), const_map),
                pl.BlockSpec((1, hidden), const_map),
                pl.BlockSpec((hidden, hidden), const_map),
                pl.BlockSpec((1, hidden), const_map),
                pl.BlockSpec((hidden, a_pad), const_map),
                pl.BlockSpec((1, a_pad), const_map),
            ],
            out_specs=pl.BlockSpec((TM, action_dim), batch_map),
        ),
        compiler_params=pltpu.CompilerParams(
            dimension_semantics=("parallel",)),
        cost_estimate=pl.CostEstimate(
            flops=int(flops),
            transcendentals=int(transcendentals),
            bytes_accessed=int(bytes_accessed)),
    )(x_in, w1, b1, w2, b2, w3, b3)

    return out[:B, :]   # drop padded batch rows


def init_policy_net_params(key, input_dim, action_dim, hidden_dim=128):
    """Deterministic init mimicking nn.Linear's U(-1/sqrt(fan_in), +)."""
    ks = jax.random.split(key, 6)

    def linear(kw, kb, fan_in, fan_out):
        bound = 1.0 / jnp.sqrt(jnp.float32(fan_in))
        w = jax.random.uniform(kw, (fan_in, fan_out), jnp.float32, -bound, bound)
        b = jax.random.uniform(kb, (fan_out,), jnp.float32, -bound, bound)
        return w, b

    w1, b1 = linear(ks[0], ks[1], input_dim, hidden_dim)
    w2, b2 = linear(ks[2], ks[3], hidden_dim, hidden_dim)
    w3, b3 = linear(ks[4], ks[5], hidden_dim, action_dim)
    return (w1, b1, w2, b2, w3, b3)


def policy_net_ref(x, params):
    """Pure-JAX f32 reference."""
    w1, b1, w2, b2, w3, b3 = params
    h = jnp.maximum(x @ w1 + b1, 0.0)
    h = jnp.maximum(h @ w2 + b2, 0.0)
    return jax.nn.softmax(h @ w3 + b3, axis=-1)


if __name__ == "__main__":
    key = jax.random.PRNGKey(0)
    k_x, k_p = jax.random.split(key)

    batch, input_dim, action_dim, hidden_dim = 8, 16, 8, 128

    x = jax.random.normal(k_x, (batch, input_dim), jnp.float32)
    params = init_policy_net_params(k_p, input_dim, action_dim, hidden_dim)
    # One-time weight prep (padding + bf16 casts) hoisted out of the call path.
    prep, a_dim = prepare_params(params)

    fwd = jax.jit(functools.partial(policy_net_forward, action_dim=a_dim, tm=1024))
    out = jax.block_until_ready(fwd(x, prep))

    ref = policy_net_ref(x, params)
    assert out.shape == (batch, action_dim)
    # bf16 matmul operands -> loosened elementwise tolerance vs f32 reference.
    assert jnp.allclose(out, ref, atol=2e-2, rtol=2e-2), "mismatch vs reference"
    # Exact softmax normalization -> rows sum to 1 within f32 rounding.
    assert jnp.allclose(jnp.sum(out, axis=-1), 1.0, atol=1e-3), \
        "softmax rows must sum to ~1"

    print("KERNEL_OK")
</pallas_src>

<mosaic_0001>
module attributes {stable_mosaic.version = 11 : i64} {
  func.func @policy_net_kernel(%arg0: i32, %arg1: memref<16x16xf32, #tpu.memory_space<vmem>>, %arg2: memref<16x128xbf16, #tpu.memory_space<vmem>>, %arg3: memref<1x128xf32, #tpu.memory_space<vmem>>, %arg4: memref<128x128xbf16, #tpu.memory_space<vmem>>, %arg5: memref<1x128xf32, #tpu.memory_space<vmem>>, %arg6: memref<128x128xbf16, #tpu.memory_space<vmem>>, %arg7: memref<1x128xf32, #tpu.memory_space<vmem>>, %arg8: memref<16x8xf32, #tpu.memory_space<vmem>>) attributes {dimension_semantics = [#tpu.dimension_semantics<parallel>], iteration_bounds = array<i64: 1>, scalar_prefetch = 0 : i64, scratch_operands = 0 : i64, tpu.core_type = #tpu.core_type<tc>, window_params = [{transform_indices = @transform_0, window_bounds = array<i64: 16, 16>}, {pipeline_mode = #tpu.pipeline_mode<synchronous>, transform_indices = @transform_1, window_bounds = array<i64: 16, 128>}, {pipeline_mode = #tpu.pipeline_mode<synchronous>, transform_indices = @transform_2, window_bounds = array<i64: 1, 128>}, {pipeline_mode = #tpu.pipeline_mode<synchronous>, transform_indices = @transform_3, window_bounds = array<i64: 128, 128>}, {pipeline_mode = #tpu.pipeline_mode<synchronous>, transform_indices = @transform_4, window_bounds = array<i64: 1, 128>}, {pipeline_mode = #tpu.pipeline_mode<synchronous>, transform_indices = @transform_5, window_bounds = array<i64: 128, 128>}, {pipeline_mode = #tpu.pipeline_mode<synchronous>, transform_indices = @transform_6, window_bounds = array<i64: 1, 128>}, {transform_indices = @transform_7, window_bounds = array<i64: 16, 8>}]} {
    %c0 = arith.constant 0 : index
    %c0_0 = arith.constant 0 : index
    %0 = vector.load %arg1[%c0, %c0_0] : memref<16x16xf32, #tpu.memory_space<vmem>>, vector<16x16xf32>
    %1 = arith.truncf %0 : vector<16x16xf32> to vector<16x16xbf16>
    %c0_1 = arith.constant 0 : index
    %c0_2 = arith.constant 0 : index
    %2 = vector.load %arg2[%c0_1, %c0_2] : memref<16x128xbf16, #tpu.memory_space<vmem>>, vector<16x128xbf16>
    %cst = arith.constant dense<0.000000e+00> : vector<16x128xf32>
    %3 = tpu.matmul %1, %2, %cst {dimension_numbers = #tpu.dot_dimension_numbers<[1], [0], [0], [1], [0, 0, 1, 1], [], []>} : vector<16x16xbf16>, vector<16x128xbf16>, vector<16x128xf32> -> vector<16x128xf32>
    %c0_3 = arith.constant 0 : index
    %c0_4 = arith.constant 0 : index
    %4 = vector.load %arg3[%c0_3, %c0_4] : memref<1x128xf32, #tpu.memory_space<vmem>>, vector<1x128xf32>
    %5 = vector.broadcast %4 : vector<1x128xf32> to vector<16x128xf32>
    %6 = arith.addf %3, %5 : vector<16x128xf32>
    %cst_5 = arith.constant 0.000000e+00 : f32
    %7 = vector.broadcast %cst_5 : f32 to vector<16x128xf32>
    %8 = arith.maximumf %6, %7 : vector<16x128xf32>
    %9 = arith.truncf %8 : vector<16x128xf32> to vector<16x128xbf16>
    %c0_6 = arith.constant 0 : index
    %c0_7 = arith.constant 0 : index
    %10 = vector.load %arg4[%c0_6, %c0_7] : memref<128x128xbf16, #tpu.memory_space<vmem>>, vector<128x128xbf16>
    %cst_8 = arith.constant dense<0.000000e+00> : vector<16x128xf32>
    %11 = tpu.matmul %9, %10, %cst_8 {dimension_numbers = #tpu.dot_dimension_numbers<[1], [0], [0], [1], [0, 0, 1, 1], [], []>} : vector<16x128xbf16>, vector<128x128xbf16>, vector<16x128xf32> -> vector<16x128xf32>
    %c0_9 = arith.constant 0 : index
    %c0_10 = arith.constant 0 : index
    %12 = vector.load %arg5[%c0_9, %c0_10] : memref<1x128xf32, #tpu.memory_space<vmem>>, vector<1x128xf32>
    %13 = vector.broadcast %12 : vector<1x128xf32> to vector<16x128xf32>
    %14 = arith.addf %11, %13 : vector<16x128xf32>
    %cst_11 = arith.constant 0.000000e+00 : f32
    %15 = vector.broadcast %cst_11 : f32 to vector<16x128xf32>
    %16 = arith.maximumf %14, %15 : vector<16x128xf32>
    %17 = arith.truncf %16 : vector<16x128xf32> to vector<16x128xbf16>
    %c0_12 = arith.constant 0 : index
    %c0_13 = arith.constant 0 : index
    %18 = vector.load %arg6[%c0_12, %c0_13] : memref<128x128xbf16, #tpu.memory_space<vmem>>, vector<128x128xbf16>
    %cst_14 = arith.constant dense<0.000000e+00> : vector<16x128xf32>
    %19 = tpu.matmul %17, %18, %cst_14 {dimension_numbers = #tpu.dot_dimension_numbers<[1], [0], [0], [1], [0, 0, 1, 1], [], []>} : vector<16x128xbf16>, vector<128x128xbf16>, vector<16x128xf32> -> vector<16x128xf32>
    %c0_15 = arith.constant 0 : index
    %c0_16 = arith.constant 0 : index
    %20 = vector.load %arg7[%c0_15, %c0_16] : memref<1x128xf32, #tpu.memory_space<vmem>>, vector<1x128xf32>
    %21 = vector.broadcast %20 : vector<1x128xf32> to vector<16x128xf32>
    %22 = arith.addf %19, %21 : vector<16x128xf32>
    %cst_17 = arith.constant dense<0xFF800000> : vector<16xf32>
    %23 = vector.multi_reduction <maximumf>, %22, %cst_17 [1] : vector<16x128xf32> to vector<16xf32>
    %24 = vector.shape_cast %23 : vector<16xf32> to vector<16x1xf32>
    %25 = vector.broadcast %24 : vector<16x1xf32> to vector<16x128xf32>
    %26 = arith.subf %22, %25 : vector<16x128xf32>
    %27 = math.exp %26 : vector<16x128xf32>
    %cst_18 = arith.constant dense<0.000000e+00> : vector<16xf32>
    %28 = vector.multi_reduction <add>, %27, %cst_18 [1] : vector<16x128xf32> to vector<16xf32>
    %29 = vector.shape_cast %28 : vector<16xf32> to vector<16x1xf32>
    %30 = vector.broadcast %29 : vector<16x1xf32> to vector<16x128xf32>
    %31 = arith.divf %27, %30 : vector<16x128xf32>
    %32 = vector.extract_strided_slice %31 {offsets = [0, 0], sizes = [16, 8], strides = [1, 1]} : vector<16x128xf32> to vector<16x8xf32>
    %c0_19 = arith.constant 0 : index
    %c0_20 = arith.constant 0 : index
    %33 = vector.load %arg8[%c0_19, %c0_20] : memref<16x8xf32, #tpu.memory_space<vmem>>, vector<16x8xf32>
    tpu.vector_store %arg8[%c0_19, %c0_20], %32 {strides = array<i32>} : memref<16x8xf32, #tpu.memory_space<vmem>>, vector<16x8xf32>,
    return
  }
  func.func @transform_0(%arg0: i32) -> (i32, i32) {
    %c0_i32 = arith.constant 0 : i32
    %c0_i32_0 = arith.constant 0 : i32
    return %arg0, %c0_i32 : i32, i32
  }
  func.func @transform_1(%arg0: i32) -> (i32, i32) {
    %c0_i32 = arith.constant 0 : i32
    %c0_i32_0 = arith.constant 0 : i32
    %c0_i32_1 = arith.constant 0 : i32
    return %c0_i32, %c0_i32_0 : i32, i32
  }
  func.func @transform_2(%arg0: i32) -> (i32, i32) {
    %c0_i32 = arith.constant 0 : i32
    %c0_i32_0 = arith.constant 0 : i32
    %c0_i32_1 = arith.constant 0 : i32
    return %c0_i32, %c0_i32_0 : i32, i32
  }
  func.func @transform_3(%arg0: i32) -> (i32, i32) {
    %c0_i32 = arith.constant 0 : i32
    %c0_i32_0 = arith.constant 0 : i32
    %c0_i32_1 = arith.constant 0 : i32
    return %c0_i32, %c0_i32_0 : i32, i32
  }
  func.func @transform_4(%arg0: i32) -> (i32, i32) {
    %c0_i32 = arith.constant 0 : i32
    %c0_i32_0 = arith.constant 0 : i32
    %c0_i32_1 = arith.constant 0 : i32
    return %c0_i32, %c0_i32_0 : i32, i32
  }
  func.func @transform_5(%arg0: i32) -> (i32, i32) {
    %c0_i32 = arith.constant 0 : i32
    %c0_i32_0 = arith.constant 0 : i32
    %c0_i32_1 = arith.constant 0 : i32
    return %c0_i32, %c0_i32_0 : i32, i32
  }
  func.func @transform_6(%arg0: i32) -> (i32, i32) {
    %c0_i32 = arith.constant 0 : i32
    %c0_i32_0 = arith.constant 0 : i32
    %c0_i32_1 = arith.constant 0 : i32
    return %c0_i32, %c0_i32_0 : i32, i32
  }
  func.func @transform_7(%arg0: i32) -> (i32, i32) {
    %c0_i32 = arith.constant 0 : i32
    %c0_i32_0 = arith.constant 0 : i32
    return %arg0, %c0_i32 : i32, i32
  }
}

</mosaic_0001>

<llo_original>
// kernel: policy_net_forward.1
$region0: #{policy_net_forward.1}
  #allocation0 [shape = 'u32[]', space=smem, size = 0x4, offset = 0x4, fixed_abs, tag = 'smem constant byte address 0x4 - core index']
  #allocation1 [shape = 'u32[72,128]{1,0:T(1,128)}', space=vmem, size = 0x9000, scoped, tag = 'internal scratch']
  %s0 = inlined_call_operand.vmem [shape: f32[16,16], index: 0, kind: input, shape index: {}]
  %s1 = inlined_call_operand.vmem [shape: bf16[16,128], index: 1, kind: input, shape index: {}]
  %s2 = inlined_call_operand.vmem [shape: f32[1,128], index: 2, kind: input, shape index: {}]
  %s3 = inlined_call_operand.hbm [shape: bf16[128,128], index: 3, kind: input, shape index: {}]
  %s4 = inlined_call_operand.vmem [shape: f32[1,128], index: 4, kind: input, shape index: {}]
  %s5 = inlined_call_operand.hbm [shape: bf16[128,128], index: 5, kind: input, shape index: {}]
  %s6 = inlined_call_operand.vmem [shape: f32[1,128], index: 6, kind: input, shape index: {}]
  %s7 = inlined_call_operand.vmem [shape: f32[16,8], index: 7, kind: output, shape index: {}]
  %s8 = sld [smem:[#allocation0]]
  $region46: #{policy_net_forward.1} parent=0
    _
  %s10 = ssub.s32 1, %s8
  %s11 = scalar_select 0, %s10, %s8
  $region1: #{policy_net_forward.1} parent=0
    #allocation2 [shape = 'u8[32768]{0}', space=vmem, size = 0x8000, scoped, tag = 'input window, operand 3, single buffered']
    #allocation3 [shape = 's32[1]{0}', space=sflag, size = 0x4, scoped, tag = 'scoped memory for policy_net_forward.1']
    #allocation4 [shape = 'u8[32768]{0}', space=vmem, size = 0x8000, scoped, tag = 'input window, operand 5, single buffered']
    #allocation5 [shape = 's32[1]{0}', space=sflag, size = 0x4, scoped, tag = 'scoped memory for policy_net_forward.1']
    %12 = vsyncpa [#allocation3], 0
    %13 = vsyncpa [#allocation5], 0
    // Predicated region
    $region2: #{policy_net_forward.1} parent=1 // pred_check
      _
    $region3: #{policy_net_forward.1} parent=1 // pred_check_branch
      %15 = sbr.rel (0) target = $region5
    $region4: #{policy_net_forward.1} parent=1 // pred_region
      _
    $region5: #{policy_net_forward.1} parent=1 // pred_fallthru
      _
    // Predicated region
    $region6: #{policy_net_forward.1} parent=1 // pred_check
      _
    $region7: #{policy_net_forward.1} parent=1 // pred_check_branch
      %17 = sbr.rel (0) target = $region9
    $region8: #{policy_net_forward.1} parent=1 // pred_region
      _
    $region9: #{policy_net_forward.1} parent=1 // pred_fallthru
      _
    // Predicated region
    $region10: #{policy_net_forward.1} parent=1 // pred_check
      _
    $region11: #{policy_net_forward.1} parent=1 // pred_check_branch
      %19 = sbr.rel (0) target = $region13
    $region12: #{policy_net_forward.1} parent=1 // pred_region
      _
    $region13: #{policy_net_forward.1} parent=1 // pred_fallthru
      _
    // Predicated region
    $region14: #{policy_net_forward.1} parent=1 // pred_check
      _
    $region15: #{policy_net_forward.1} parent=1 // pred_check_branch
      %21 = sbr.rel (0) target = $region17
    $region16: #{policy_net_forward.1} parent=1 // pred_region
      %23 = vsyncadd [#allocation3], 0
      %s24 = sshll.u32 %s3, 4
      %s25 = int_to_ptr.hbm [resolvable:$true] %s24
      %s26 = sshll.u32 [#allocation2], 4
      %s27 = int_to_ptr.vmem [resolvable:$true] %s26
      %32 = dma.hbm_to_vmem [thread:$0]  %s25, 1024, %s27, [#allocation3], 64, 64, 4
    $region17: #{policy_net_forward.1} parent=1 // pred_fallthru
      _
    // Predicated region
    $region18: #{policy_net_forward.1} parent=1 // pred_check
      _
    $region19: #{policy_net_forward.1} parent=1 // pred_check_branch
      %34 = sbr.rel (0) target = $region21
    $region20: #{policy_net_forward.1} parent=1 // pred_region
      _
    $region21: #{policy_net_forward.1} parent=1 // pred_fallthru
      _
    // Predicated region
    $region22: #{policy_net_forward.1} parent=1 // pred_check
      _
    $region23: #{policy_net_forward.1} parent=1 // pred_check_branch
      %36 = sbr.rel (0) target = $region25
    $region24: #{policy_net_forward.1} parent=1 // pred_region
      %38 = vsyncadd [#allocation5], 0
      %s39 = sshll.u32 %s5, 4
      %s40 = int_to_ptr.hbm [resolvable:$true] %s39
      %s41 = sshll.u32 [#allocation4], 4
      %s42 = int_to_ptr.vmem [resolvable:$true] %s41
      %47 = dma.hbm_to_vmem [thread:$0]  %s40, 1024, %s42, [#allocation5], 64, 64, 4
    $region25: #{policy_net_forward.1} parent=1 // pred_fallthru
      _
    // Predicated region
    $region26: #{policy_net_forward.1} parent=1 // pred_check
      _
    $region27: #{policy_net_forward.1} parent=1 // pred_check_branch
      %49 = sbr.rel (0) target = $region29
    $region28: #{policy_net_forward.1} parent=1 // pred_region
      _
    $region29: #{policy_net_forward.1} parent=1 // pred_fallthru
      _
    // Predicated region
    $region30: #{policy_net_forward.1} parent=1 // pred_check
      _
    $region31: #{policy_net_forward.1} parent=1 // pred_check_branch
      %51 = sbr.rel (0) target = $region33
    $region32: #{policy_net_forward.1} parent=1 // pred_region
      %53 = dma.done [#allocation3], 1024
    $region33: #{policy_net_forward.1} parent=1 // pred_fallthru
      _
    // Predicated region
    $region34: #{policy_net_forward.1} parent=1 // pred_check
      _
    $region35: #{policy_net_forward.1} parent=1 // pred_check_branch
      %55 = sbr.rel (0) target = $region37
    $region36: #{policy_net_forward.1} parent=1 // pred_region
      %57 = dma.done [#allocation5], 1024
    $region37: #{policy_net_forward.1} parent=1 // pred_fallthru
      _
    %v59 = vld [vmem:[%s0] sm:$0xff]
    %v60 = vld [vmem:[%s0 + $0x8] sm:$0xff]
    %v61 = vpack.c.bf16 %v60, %v59
    %v62 = vld [vmem:[%s1] sm:$0xf]
    %v63 = vld [vmem:[%s1 + $0x4] sm:$0xf]
    %v64 = vld [vmem:[%s2] sm:$0x1]
    %v66 = vperm.slane %v64, 0
    %v70 = vunpack.c.l.b16 %v62
    %v71 = vunpack.c.l.b16 %v63
    %v72 = vpack.c.b16 %v71, %v70
    %vm74 = vcmask 130048
    %v76 = vsel %vm74, %v61, 0
    %78 = vmatpush.bf16.msra.mxu0 0
    %79 = vmatpush.bf16.msra.mxu0 0
    %80 = vmatpush.bf16.msra.mxu0 0
    %81 = vmatpush.bf16.msra.mxu0 0
    %82 = vmatpush.bf16.msra.mxu0 0
    %83 = vmatpush.bf16.msra.mxu0 0
    %84 = vmatpush.bf16.msra.mxu0 0
    %85 = vmatpush.bf16.msra.mxu0 %v72
    %86 = vmatmul.bf16.gmra.mxu0 %v76
    %v87 = vpop.f32.mrf.mxu0
    %v88 = vadd.f32 %v66, %v87
    %v89 = vpop.f32.mrf.mxu0
    %v90 = vadd.f32 %v66, %v89
    %91 = vdwg.mxu0
    %v92 = vmax.f32 %v88, 0.0
    %v93 = vmax.f32 %v90, 0.0
    %v94 = vpack.c.bf16 %v93, %v92
    %v95 = vld [vmem:[#allocation2] sm:$0xf]
    %v96 = vld [vmem:[#allocation2 + $0x4] sm:$0xf]
    %v97 = vld [vmem:[#allocation2 + $0x8] sm:$0xf]
    %v98 = vld [vmem:[#allocation2 + $0xc] sm:$0xf]
    %v99 = vld [vmem:[#allocation2 + $0x10] sm:$0xf]
    %v100 = vld [vmem:[#allocation2 + $0x14] sm:$0xf]
    %v101 = vld [vmem:[#allocation2 + $0x18] sm:$0xf]
    %v102 = vld [vmem:[#allocation2 + $0x1c] sm:$0xf]
    %v103 = vld [vmem:[#allocation2 + $0x20] sm:$0xf]
    %v104 = vld [vmem:[#allocation2 + $0x24] sm:$0xf]
    %v105 = vld [vmem:[#allocation2 + $0x28] sm:$0xf]
    %v106 = vld [vmem:[#allocation2 + $0x2c] sm:$0xf]
    %v107 = vld [vmem:[#allocation2 + $0x30] sm:$0xf]
    %v108 = vld [vmem:[#allocation2 + $0x34] sm:$0xf]
    %v109 = vld [vmem:[#allocation2 + $0x38] sm:$0xf]
    %v110 = vld [vmem:[#allocation2 + $0x3c] sm:$0xf]
    %v111 = vld [vmem:[%s4] sm:$0x1]
    %v113 = vperm.slane %v111, 0
    %v131 = vunpack.c.l.b16 %v95
    %v132 = vunpack.c.l.b16 %v96
    %v133 = vunpack.c.l.b16 %v97
    %v134 = vunpack.c.l.b16 %v98
    %v135 = vunpack.c.l.b16 %v99
    %v136 = vunpack.c.l.b16 %v100
    %v137 = vunpack.c.l.b16 %v101
    %v138 = vunpack.c.l.b16 %v102
    %v139 = vunpack.c.l.b16 %v103
    %v140 = vunpack.c.l.b16 %v104
    %v141 = vunpack.c.l.b16 %v105
    %v142 = vunpack.c.l.b16 %v106
    %v143 = vunpack.c.l.b16 %v107
    %v144 = vunpack.c.l.b16 %v108
    %v145 = vunpack.c.l.b16 %v109
    %v146 = vunpack.c.l.b16 %v110
    %v147 = vpack.c.b16 %v132, %v131
    %v148 = vpack.c.b16 %v134, %v133
    %v149 = vpack.c.b16 %v136, %v135
    %v150 = vpack.c.b16 %v138, %v137
    %v151 = vpack.c.b16 %v140, %v139
    %v152 = vpack.c.b16 %v142, %v141
    %v153 = vpack.c.b16 %v144, %v143
    %v154 = vpack.c.b16 %v146, %v145
    %163 = vmatpush.bf16.msra.mxu0 %v154
    %164 = vmatpush.bf16.msra.mxu0 %v153
    %165 = vmatpush.bf16.msra.mxu0 %v152
    %166 = vmatpush.bf16.msra.mxu0 %v151
    %167 = vmatpush.bf16.msra.mxu0 %v150
    %168 = vmatpush.bf16.msra.mxu0 %v149
    %169 = vmatpush.bf16.msra.mxu0 %v148
    %170 = vmatpush.bf16.msra.mxu0 %v147
    %171 = vmatmul.bf16.gmra.mxu0 %v94
    %v172 = vpop.f32.mrf.mxu0
    %v173 = vadd.f32 %v113, %v172
    %v174 = vpop.f32.mrf.mxu0
    %v175 = vadd.f32 %v113, %v174
    %176 = vdwg.mxu0
    %v177 = vmax.f32 %v173, 0.0
    %v178 = vmax.f32 %v175, 0.0
    %v179 = vpack.c.bf16 %v178, %v177
    %v180 = vld [vmem:[#allocation4] sm:$0xf]
    %v181 = vld [vmem:[#allocation4 + $0x4] sm:$0xf]
    %v182 = vld [vmem:[#allocation4 + $0x8] sm:$0xf]
    %v183 = vld [vmem:[#allocation4 + $0xc] sm:$0xf]
    %v184 = vld [vmem:[#allocation4 + $0x10] sm:$0xf]
    %v185 = vld [vmem:[#allocation4 + $0x14] sm:$0xf]
    %v186 = vld [vmem:[#allocation4 + $0x18] sm:$0xf]
    %v187 = vld [vmem:[#allocation4 + $0x1c] sm:$0xf]
    %v188 = vld [vmem:[#allocation4 + $0x20] sm:$0xf]
    %v189 = vld [vmem:[#allocation4 + $0x24] sm:$0xf]
    %v190 = vld [vmem:[#allocation4 + $0x28] sm:$0xf]
    %v191 = vld [vmem:[#allocation4 + $0x2c] sm:$0xf]
    %v192 = vld [vmem:[#allocation4 + $0x30] sm:$0xf]
    %v193 = vld [vmem:[#allocation4 + $0x34] sm:$0xf]
    %v194 = vld [vmem:[#allocation4 + $0x38] sm:$0xf]
    %v195 = vld [vmem:[#allocation4 + $0x3c] sm:$0xf]
    %v196 = vld [vmem:[%s6] sm:$0x1]
    %v198 = vperm.slane %v196, 0
    %v216 = vunpack.c.l.b16 %v180
    %v217 = vunpack.c.l.b16 %v181
    %v218 = vunpack.c.l.b16 %v182
    %v219 = vunpack.c.l.b16 %v183
    %v220 = vunpack.c.l.b16 %v184
    %v221 = vunpack.c.l.b16 %v185
    %v222 = vunpack.c.l.b16 %v186
    %v223 = vunpack.c.l.b16 %v187
    %v224 = vunpack.c.l.b16 %v188
    %v225 = vunpack.c.l.b16 %v189
    %v226 = vunpack.c.l.b16 %v190
    %v227 = vunpack.c.l.b16 %v191
    %v228 = vunpack.c.l.b16 %v192
    %v229 = vunpack.c.l.b16 %v193
    %v230 = vunpack.c.l.b16 %v194
    %v231 = vunpack.c.l.b16 %v195
    %v232 = vpack.c.b16 %v217, %v216
    %v233 = vpack.c.b16 %v219, %v218
    %v234 = vpack.c.b16 %v221, %v220
    %v235 = vpack.c.b16 %v223, %v222
    %v236 = vpack.c.b16 %v225, %v224
    %v237 = vpack.c.b16 %v227, %v226
    %v238 = vpack.c.b16 %v229, %v228
    %v239 = vpack.c.b16 %v231, %v230
    %248 = vmatpush.bf16.msra.mxu0 %v239
    %249 = vmatpush.bf16.msra.mxu0 %v238
    %250 = vmatpush.bf16.msra.mxu0 %v237
    %251 = vmatpush.bf16.msra.mxu0 %v236
    %252 = vmatpush.bf16.msra.mxu0 %v235
    %253 = vmatpush.bf16.msra.mxu0 %v234
    %254 = vmatpush.bf16.msra.mxu0 %v233
    %255 = vmatpush.bf16.msra.mxu0 %v232
    %256 = vmatmul.bf16.gmra.mxu0 %v179
    %v257 = vpop.f32.mrf.mxu0
    %v258 = vadd.f32 %v198, %v257
    %v259 = vpop.f32.mrf.mxu0
    %v260 = vadd.f32 %v198, %v259
    %261 = vdwg.mxu0
    %262 = vmax.xlane.f32.xlu0 %v258
    %v263 = vpop.xlane.xlu0 %262
    %264 = vmax.xlane.f32.xlu0 %v260
    %v265 = vpop.xlane.xlu0 %264
    %v266 = vsub.f32 %v258, %v263
    %v267 = vsub.f32 %v260, %v265
    %v268 = vmul.f32 %v266, 1.442695
    %v269 = vpow.pop %v268
    %v270 = vmul.f32 %v267, 1.442695
    %v271 = vpow.pop %v270
    %272 = vadd.xlane.f32.xlu0 %v269
    %v273 = vpop.xlane.xlu0 %272
    %274 = vadd.xlane.f32.xlu0 %v271
    %v275 = vpop.xlane.xlu0 %274
    %v276 = vrcp.pop %v273
    %v277 = vmul.f32 %v273, %v276
    %v278 = vsub.f32 1.0, %v277
    %v279 = vmul.f32 %v276, %v278
    %v280 = vadd.f32 %v276, %v279
    %vm281 = vweird.f32 %v273
    %vm282 = vweird.f32 %v276
    %vm283 = vmor %vm281, %vm282
    %v284 = vsel %vm283, %v276, %v280
    %v285 = vand.u32 2147483647, %v273
    %vm286 = vcmp.eq.f32.partialorder %v285, 8.507059e+37
    %v287 = vand.u32 %v273, 2147483648
    %v288 = vor.u32 1.1754944e-38, %v287
    %v289 = vsel %vm286, %v288, %v284
    %v290 = vmul.f32 %v269, %v289
    %v291 = vrcp.pop %v275
    %v292 = vmul.f32 %v275, %v291
    %v293 = vsub.f32 1.0, %v292
    %v294 = vmul.f32 %v291, %v293
    %v295 = vadd.f32 %v291, %v294
    %vm296 = vweird.f32 %v275
    %vm297 = vweird.f32 %v291
    %vm298 = vmor %vm296, %vm297
    %v299 = vsel %vm298, %v291, %v295
    %v300 = vand.u32 2147483647, %v275
    %vm301 = vcmp.eq.f32.partialorder %v300, 8.507059e+37
    %v302 = vand.u32 %v275, 2147483648
    %v303 = vor.u32 1.1754944e-38, %v302
    %v304 = vsel %vm301, %v303, %v299
    %v305 = vmul.f32 %v271, %v304
    %vm306 = vcmask 64512
    %307 = vst.msk [vmem:[%s7] sm:$0xff] %vm306, %v290
    %308 = vst.msk [vmem:[%s7 + $0x8] sm:$0xff] %vm306, %v305
    // Predicated region
    $region38: #{policy_net_forward.1} parent=1 // pred_check
      _
    $region39: #{policy_net_forward.1} parent=1 // pred_check_branch
      %310 = sbr.rel (0) target = $region41
    $region40: #{policy_net_forward.1} parent=1 // pred_region
      _
    $region41: #{policy_net_forward.1} parent=1 // pred_fallthru
      _
    // Predicated region
    $region42: #{policy_net_forward.1} parent=1 // pred_check
      _
    $region43: #{policy_net_forward.1} parent=1 // pred_check_branch
      %312 = sbr.rel (0) target = $region45
    $region44: #{policy_net_forward.1} parent=1 // pred_region
      _
    $region45: #{policy_net_forward.1} parent=1 // pred_fallthru
      _
    %313 = vsyncpa [#allocation3], 1
    %314 = vsyncpa [#allocation5], 1

</llo_original>
